<compile_context>
chip_gen: v7x
topology: tpu7x:2x2x1
jax: 0.10.0
libtpu: 0.0.40
codegen_flags: <defaults>
</compile_context>

<pallas_src>
import jax
import jax.numpy as jnp
from jax.experimental import pallas as pl
from jax.experimental.pallas import tpu as pltpu

H1, H2 = 256, 128        # hidden sizes from the PyTorch module
_LANE = 128              # lane width for padding the final weight/bias
_SUB = 16                # bf16 sublane packing -> batch tiles are multiples of 16


def _round_up(n, m):
    return (n + m - 1) // m * m


def _dqn_kernel(x_ref, w1_ref, w2_ref, w3_ref, b_ref, o_ref):
    out_pad = w3_ref.shape[-1]
    out_dim = o_ref.shape[-1]

    x = x_ref[...]                       # already bf16 (cast in the wrapper)

    b1 = b_ref[:, pl.ds(0, H1)]
    b2 = b_ref[:, pl.ds(H1, H2)]
    b3 = b_ref[:, pl.ds(H1 + H2, out_pad)]

    h1 = jnp.dot(x, w1_ref[...], preferred_element_type=jnp.float32) + b1
    h1 = jnp.maximum(h1, 0.0)

    h2 = jnp.dot(h1.astype(jnp.bfloat16), w2_ref[...],
                 preferred_element_type=jnp.float32) + b2
    h2 = jnp.maximum(h2, 0.0)

    out = jnp.dot(h2.astype(jnp.bfloat16), w3_ref[...],
                  preferred_element_type=jnp.float32) + b3
    # Store only the real out_dim lanes (static slice): masked vst, but ~32x
    # fewer writeback bytes for typical DQN action counts.
    o_ref[...] = out[:, :out_dim].astype(o_ref.dtype)


def dqn_forward(x, params, *, block_batch=1024, vmem_budget_bytes=20 << 20):
    """Fused DQN forward.

    x: (batch, input_dim) float32
    params: w1 (in,256), b1 (1,256), w2 (256,128), b2 (1,128),
            w3 (128,out), b3 (1,out)   -- weights pre-transposed vs. PyTorch.
    """
    batch, in_dim = x.shape
    out_dim = params["w3"].shape[1]
    out_pad = _round_up(out_dim, _LANE)

    # ---- activations to bf16 in the wrapper (halves x DMA traffic) ----
    x = x.astype(jnp.bfloat16)

    # ---- bf16 weights; final layer zero-padded to a lane-dense width ----
    w1 = params["w1"].astype(jnp.bfloat16)
    w2 = params["w2"].astype(jnp.bfloat16)
    w3 = jnp.zeros((H2, out_pad), jnp.bfloat16).at[:, :out_dim].set(
        params["w3"].astype(jnp.bfloat16))
    b3p = jnp.zeros((1, out_pad), jnp.float32).at[:, :out_dim].set(
        params["b3"].astype(jnp.float32))
    biases = jnp.concatenate(
        [params["b1"].astype(jnp.float32),
         params["b2"].astype(jnp.float32),
         b3p], axis=1)                                   # (1, 256+128+out_pad)

    # ---- adaptive batch tiling under an explicit VMEM budget ----
    weight_bytes = 2 * (w1.size * 2 + w2.size * 2 + w3.size * 2 + biases.size * 4)

    def step_bytes(tb):
        return (2 * tb * in_dim * 2                 # x tile, bf16, double-buffered
                + 2 * tb * out_dim * 4              # out tile, f32, double-buffered
                + tb * (H1 + H2 + out_pad) * 4      # f32 intermediates h1/h2/out
                + weight_bytes)                     # resident weights (x2 safety)

    padded8 = _round_up(batch, _SUB)
    tb = max(_SUB, min(_round_up(block_batch, _SUB), padded8))
    while tb > _SUB and step_bytes(tb) > vmem_budget_bytes:
        tb = max(_SUB, _round_up(tb // 2, _SUB))

    num_tiles = -(-padded8 // tb)
    # v7x megacore: guarantee >= 2 grid steps so both TensorCores get work.
    if num_tiles == 1 and padded8 >= 2 * _SUB:
        num_tiles = 2
    tb = _round_up(-(-padded8 // num_tiles), _SUB)
    padded_batch = num_tiles * tb

    if padded_batch != batch:
        x = jnp.pad(x, ((0, padded_batch - batch), (0, 0)))
    grid = (num_tiles,)

    vmem_limit_bytes = int(min(max(step_bytes(tb) + (2 << 20), 16 << 20), 48 << 20))

    flops = 2 * padded_batch * (in_dim * H1 + H1 * H2 + H2 * out_pad)
    bytes_accessed = (padded_batch * in_dim * 2 + w1.size * 2 + w2.size * 2
                      + w3.size * 2 + biases.size * 4 + padded_batch * out_dim * 4)

    out = pl.pallas_call(
        _dqn_kernel,
        out_shape=jax.ShapeDtypeStruct((padded_batch, out_dim), jnp.float32),
        grid=grid,
        in_specs=[
            pl.BlockSpec((tb, in_dim), lambda i: (i, 0)),           # x tile
            pl.BlockSpec((in_dim, H1), lambda i: (0, 0)),           # w1 resident
            pl.BlockSpec((H1, H2), lambda i: (0, 0)),               # w2 resident
            pl.BlockSpec((H2, out_pad), lambda i: (0, 0)),          # w3 resident
            pl.BlockSpec((1, H1 + H2 + out_pad), lambda i: (0, 0)),  # fused biases
        ],
        out_specs=pl.BlockSpec((tb, out_dim), lambda i: (i, 0)),
        compiler_params=pltpu.CompilerParams(
            dimension_semantics=("parallel",),
            vmem_limit_bytes=vmem_limit_bytes),
        cost_estimate=pl.CostEstimate(
            flops=flops, transcendentals=0, bytes_accessed=bytes_accessed),
    )(x, w1, w2, w3, biases)

    if padded_batch != batch:
        out = out[:batch]
    return out


def init_dqn_params(key, input_dim, output_dim):
    """Deterministic init mirroring nn.Linear's U(-1/sqrt(fan_in), 1/sqrt(fan_in))."""
    dims = [(input_dim, H1), (H1, H2), (H2, output_dim)]
    params = {}
    for i, (fan_in, fan_out) in enumerate(dims, start=1):
        key, kw, kb = jax.random.split(key, 3)
        bound = 1.0 / jnp.sqrt(float(fan_in))
        params[f"w{i}"] = jax.random.uniform(
            kw, (fan_in, fan_out), jnp.float32, -bound, bound)
        params[f"b{i}"] = jax.random.uniform(
            kb, (1, fan_out), jnp.float32, -bound, bound)
    return params


def dqn_reference_f32(x, params):
    h1 = jnp.maximum(x @ params["w1"] + params["b1"], 0.0)
    h2 = jnp.maximum(h1 @ params["w2"] + params["b2"], 0.0)
    return h2 @ params["w3"] + params["b3"]


def dqn_reference_bf16(x, params):
    """Reference mirroring the kernel's bf16-operand / f32-accumulate matmuls."""
    def mm(a, w):
        return jnp.dot(a.astype(jnp.bfloat16), w.astype(jnp.bfloat16),
                       preferred_element_type=jnp.float32)
    h1 = jnp.maximum(mm(x, params["w1"]) + params["b1"], 0.0)
    h2 = jnp.maximum(mm(h1, params["w2"]) + params["b2"], 0.0)
    return mm(h2, params["w3"]) + params["b3"]


if __name__ == "__main__":
    key = jax.random.PRNGKey(0)
    k_params, k_x = jax.random.split(key)

    batch, input_dim, output_dim = 8, 32, 4
    params = init_dqn_params(k_params, input_dim, output_dim)
    x = jax.random.normal(k_x, (batch, input_dim), jnp.float32)

    out = dqn_forward(x, params)
    jax.block_until_ready(out)

    assert out.shape == (batch, output_dim)
    ref_bf16 = dqn_reference_bf16(x, params)
    ref_f32 = dqn_reference_f32(x, params)
    assert jnp.allclose(out, ref_bf16, atol=2e-3, rtol=2e-3)
    assert jnp.allclose(out, ref_f32, atol=5e-2, rtol=5e-2)

    # sanity-check an awkward batch size exercising adaptive tiling / padding
    x2 = jax.random.normal(k_x, (37, input_dim), jnp.float32)
    out2 = dqn_forward(x2, params)
    jax.block_until_ready(out2)
    assert out2.shape == (37, output_dim)
    assert jnp.allclose(out2, dqn_reference_f32(x2, params), atol=5e-2, rtol=5e-2)

    print("KERNEL_OK")
</pallas_src>

<mosaic_0001>
module attributes {stable_mosaic.version = 11 : i64} {
  func.func @_dqn_kernel(%arg0: i32, %arg1: memref<16x32xbf16, #tpu.memory_space<vmem>>, %arg2: memref<32x256xbf16, #tpu.memory_space<vmem>>, %arg3: memref<256x128xbf16, #tpu.memory_space<vmem>>, %arg4: memref<128x128xbf16, #tpu.memory_space<vmem>>, %arg5: memref<1x512xf32, #tpu.memory_space<vmem>>, %arg6: memref<16x4xf32, #tpu.memory_space<vmem>>) attributes {dimension_semantics = [#tpu.dimension_semantics<parallel>], iteration_bounds = array<i64: 1>, scalar_prefetch = 0 : i64, scratch_operands = 0 : i64, tpu.core_type = #tpu.core_type<tc>, window_params = [{transform_indices = @transform_0, window_bounds = array<i64: 16, 32>}, {pipeline_mode = #tpu.pipeline_mode<synchronous>, transform_indices = @transform_1, window_bounds = array<i64: 32, 256>}, {pipeline_mode = #tpu.pipeline_mode<synchronous>, transform_indices = @transform_2, window_bounds = array<i64: 256, 128>}, {pipeline_mode = #tpu.pipeline_mode<synchronous>, transform_indices = @transform_3, window_bounds = array<i64: 128, 128>}, {pipeline_mode = #tpu.pipeline_mode<synchronous>, transform_indices = @transform_4, window_bounds = array<i64: 1, 512>}, {transform_indices = @transform_5, window_bounds = array<i64: 16, 4>}]} {
    %c0 = arith.constant 0 : index
    %c0_0 = arith.constant 0 : index
    %0 = vector.load %arg1[%c0, %c0_0] : memref<16x32xbf16, #tpu.memory_space<vmem>>, vector<16x32xbf16>
    %c0_1 = arith.constant 0 : index
    %c0_2 = arith.constant 0 : index
    %1 = vector.load %arg5[%c0_1, %c0_2] : memref<1x512xf32, #tpu.memory_space<vmem>>, vector<1x256xf32>
    %c0_3 = arith.constant 0 : index
    %c256 = arith.constant 256 : index
    %2 = vector.load %arg5[%c0_3, %c256] : memref<1x512xf32, #tpu.memory_space<vmem>>, vector<1x128xf32>
    %c0_4 = arith.constant 0 : index
    %c384 = arith.constant 384 : index
    %3 = vector.load %arg5[%c0_4, %c384] : memref<1x512xf32, #tpu.memory_space<vmem>>, vector<1x128xf32>
    %c0_5 = arith.constant 0 : index
    %c0_6 = arith.constant 0 : index
    %4 = vector.load %arg2[%c0_5, %c0_6] : memref<32x256xbf16, #tpu.memory_space<vmem>>, vector<32x256xbf16>
    %cst = arith.constant dense<0.000000e+00> : vector<16x256xf32>
    %5 = tpu.matmul %0, %4, %cst {dimension_numbers = #tpu.dot_dimension_numbers<[1], [0], [0], [1], [0, 0, 1, 1], [], []>} : vector<16x32xbf16>, vector<32x256xbf16>, vector<16x256xf32> -> vector<16x256xf32>
    %6 = vector.broadcast %1 : vector<1x256xf32> to vector<16x256xf32>
    %7 = arith.addf %5, %6 : vector<16x256xf32>
    %cst_7 = arith.constant 0.000000e+00 : f32
    %8 = vector.broadcast %cst_7 : f32 to vector<16x256xf32>
    %9 = arith.maximumf %7, %8 : vector<16x256xf32>
    %10 = arith.truncf %9 : vector<16x256xf32> to vector<16x256xbf16>
    %c0_8 = arith.constant 0 : index
    %c0_9 = arith.constant 0 : index
    %11 = vector.load %arg3[%c0_8, %c0_9] : memref<256x128xbf16, #tpu.memory_space<vmem>>, vector<256x128xbf16>
    %cst_10 = arith.constant dense<0.000000e+00> : vector<16x128xf32>
    %12 = tpu.matmul %10, %11, %cst_10 {dimension_numbers = #tpu.dot_dimension_numbers<[1], [0], [0], [1], [0, 0, 1, 1], [], []>} : vector<16x256xbf16>, vector<256x128xbf16>, vector<16x128xf32> -> vector<16x128xf32>
    %13 = vector.broadcast %2 : vector<1x128xf32> to vector<16x128xf32>
    %14 = arith.addf %12, %13 : vector<16x128xf32>
    %cst_11 = arith.constant 0.000000e+00 : f32
    %15 = vector.broadcast %cst_11 : f32 to vector<16x128xf32>
    %16 = arith.maximumf %14, %15 : vector<16x128xf32>
    %17 = arith.truncf %16 : vector<16x128xf32> to vector<16x128xbf16>
    %c0_12 = arith.constant 0 : index
    %c0_13 = arith.constant 0 : index
    %18 = vector.load %arg4[%c0_12, %c0_13] : memref<128x128xbf16, #tpu.memory_space<vmem>>, vector<128x128xbf16>
    %cst_14 = arith.constant dense<0.000000e+00> : vector<16x128xf32>
    %19 = tpu.matmul %17, %18, %cst_14 {dimension_numbers = #tpu.dot_dimension_numbers<[1], [0], [0], [1], [0, 0, 1, 1], [], []>} : vector<16x128xbf16>, vector<128x128xbf16>, vector<16x128xf32> -> vector<16x128xf32>
    %20 = vector.broadcast %3 : vector<1x128xf32> to vector<16x128xf32>
    %21 = arith.addf %19, %20 : vector<16x128xf32>
    %22 = vector.extract_strided_slice %21 {offsets = [0, 0], sizes = [16, 4], strides = [1, 1]} : vector<16x128xf32> to vector<16x4xf32>
    %c0_15 = arith.constant 0 : index
    %c0_16 = arith.constant 0 : index
    %23 = vector.load %arg6[%c0_15, %c0_16] : memref<16x4xf32, #tpu.memory_space<vmem>>, vector<16x4xf32>
    tpu.vector_store %arg6[%c0_15, %c0_16], %22 {strides = array<i32>} : memref<16x4xf32, #tpu.memory_space<vmem>>, vector<16x4xf32>,
    return
  }
  func.func @transform_0(%arg0: i32) -> (i32, i32) {
    %c0_i32 = arith.constant 0 : i32
    %c0_i32_0 = arith.constant 0 : i32
    return %arg0, %c0_i32 : i32, i32
  }
  func.func @transform_1(%arg0: i32) -> (i32, i32) {
    %c0_i32 = arith.constant 0 : i32
    %c0_i32_0 = arith.constant 0 : i32
    %c0_i32_1 = arith.constant 0 : i32
    return %c0_i32, %c0_i32_0 : i32, i32
  }
  func.func @transform_2(%arg0: i32) -> (i32, i32) {
    %c0_i32 = arith.constant 0 : i32
    %c0_i32_0 = arith.constant 0 : i32
    %c0_i32_1 = arith.constant 0 : i32
    return %c0_i32, %c0_i32_0 : i32, i32
  }
  func.func @transform_3(%arg0: i32) -> (i32, i32) {
    %c0_i32 = arith.constant 0 : i32
    %c0_i32_0 = arith.constant 0 : i32
    %c0_i32_1 = arith.constant 0 : i32
    return %c0_i32, %c0_i32_0 : i32, i32
  }
  func.func @transform_4(%arg0: i32) -> (i32, i32) {
    %c0_i32 = arith.constant 0 : i32
    %c0_i32_0 = arith.constant 0 : i32
    %c0_i32_1 = arith.constant 0 : i32
    return %c0_i32, %c0_i32_0 : i32, i32
  }
  func.func @transform_5(%arg0: i32) -> (i32, i32) {
    %c0_i32 = arith.constant 0 : i32
    %c0_i32_0 = arith.constant 0 : i32
    return %arg0, %c0_i32 : i32, i32
  }
}

</mosaic_0001>

<llo_original>
// kernel: tpu_custom_call.1
$region0: #{tpu_custom_call.1}
  #allocation0 [shape = 'u32[]', space=smem, size = 0x4, offset = 0x4, fixed_abs, tag = 'smem constant byte address 0x4 - core index']
  #allocation1 [shape = 'u32[144,128]{1,0:T(1,128)}', space=vmem, size = 0x12000, scoped, tag = 'internal scratch']
  %s0 = inlined_call_operand.hbm [shape: bf16[16,32], index: 0, kind: input, shape index: {}]
  %s1 = inlined_call_operand.hbm [shape: bf16[32,256], index: 1, kind: input, shape index: {}]
  %s2 = inlined_call_operand.hbm [shape: bf16[256,128], index: 2, kind: input, shape index: {}]
  %s3 = inlined_call_operand.hbm [shape: bf16[128,128], index: 3, kind: input, shape index: {}]
  %s4 = inlined_call_operand.vmem [shape: f32[1,512], index: 4, kind: input, shape index: {}]
  %s5 = inlined_call_operand.vmem [shape: f32[16,4], index: 5, kind: output, shape index: {}]
  %s6 = sld [smem:[#allocation0]]
  $region46: #{tpu_custom_call.1} parent=0
    _
  %s8 = ssub.s32 1, %s6
  %s9 = scalar_select 0, %s8, %s6
  $region1: #{tpu_custom_call.1} parent=0
    #allocation2 [shape = 'u8[4096]{0}', space=vmem, size = 0x1000, scoped, tag = 'input window, operand 0, single buffered']
    #allocation3 [shape = 's32[1]{0}', space=sflag, size = 0x4, scoped, tag = 'scoped memory for tpu_custom_call.1']
    #allocation4 [shape = 'u8[16384]{0}', space=vmem, size = 0x4000, scoped, tag = 'input window, operand 1, single buffered']
    #allocation5 [shape = 's32[1]{0}', space=sflag, size = 0x4, scoped, tag = 'scoped memory for tpu_custom_call.1']
    #allocation6 [shape = 'u8[65536]{0}', space=vmem, size = 0x10000, scoped, tag = 'input window, operand 2, single buffered']
    #allocation7 [shape = 'u8[32768]{0}', space=vmem, size = 0x8000, scoped, tag = 'input window, operand 3, single buffered']
    #allocation8 [shape = 's32[1]{0}', space=sflag, size = 0x4, scoped, tag = 'scoped memory for tpu_custom_call.1']
    %10 = vsyncpa [#allocation3], 0
    %11 = vsyncpa [#allocation5], 0
    %12 = vsyncpa [#allocation8], 0
    // Predicated region
    $region2: #{tpu_custom_call.1} parent=1 // pred_check
      _
    $region3: #{tpu_custom_call.1} parent=1 // pred_check_branch
      %14 = sbr.rel (0) target = $region5
    $region4: #{tpu_custom_call.1} parent=1 // pred_region
      %s16 = ssub.s32 128, 128
      %17 = vsyncadd [#allocation3], %s16
      %s18 = sshll.u32 [#allocation2], 4
      %s19 = int_to_ptr.vmem [resolvable:$true] %s18
      %24 = dma.hbm_to_vmem [thread:$0]  %s0, 128, %s19, [#allocation3], 64, 64, 4
    $region5: #{tpu_custom_call.1} parent=1 // pred_fallthru
      _
    // Predicated region
    $region6: #{tpu_custom_call.1} parent=1 // pred_check
      _
    $region7: #{tpu_custom_call.1} parent=1 // pred_check_branch
      %26 = sbr.rel (0) target = $region9
    $region8: #{tpu_custom_call.1} parent=1 // pred_region
      %s28 = ssub.s32 512, 512
      %29 = vsyncadd [#allocation5], %s28
      %s30 = sshll.u32 [#allocation4], 4
      %s31 = int_to_ptr.vmem [resolvable:$true] %s30
      %36 = dma.hbm_to_vmem [thread:$0]  %s1, 512, %s31, [#allocation5], 128, 128, 8
    $region9: #{tpu_custom_call.1} parent=1 // pred_fallthru
      _
    // Predicated region
    $region10: #{tpu_custom_call.1} parent=1 // pred_check
      _
    $region11: #{tpu_custom_call.1} parent=1 // pred_check_branch
      %38 = sbr.rel (0) target = $region13
    $region12: #{tpu_custom_call.1} parent=1 // pred_region
      %s40 = ssub.s32 2048, 2048
      %41 = vsyncadd [#allocation5], %s40
      %s42 = sshll.u32 [#allocation6], 4
      %s43 = int_to_ptr.vmem [resolvable:$true] %s42
      %48 = dma.hbm_to_vmem [thread:$0]  %s2, 2048, %s43, [#allocation5], 64, 64, 4
    $region13: #{tpu_custom_call.1} parent=1 // pred_fallthru
      _
    // Predicated region
    $region14: #{tpu_custom_call.1} parent=1 // pred_check
      _
    $region15: #{tpu_custom_call.1} parent=1 // pred_check_branch
      %50 = sbr.rel (0) target = $region17
    $region16: #{tpu_custom_call.1} parent=1 // pred_region
      %s52 = ssub.s32 1024, 1024
      %53 = vsyncadd [#allocation8], %s52
      %s54 = sshll.u32 [#allocation7], 4
      %s55 = int_to_ptr.vmem [resolvable:$true] %s54
      %60 = dma.hbm_to_vmem [thread:$0]  %s3, 1024, %s55, [#allocation8], 64, 64, 4
    $region17: #{tpu_custom_call.1} parent=1 // pred_fallthru
      _
    // Predicated region
    $region18: #{tpu_custom_call.1} parent=1 // pred_check
      _
    $region19: #{tpu_custom_call.1} parent=1 // pred_check_branch
      %62 = sbr.rel (0) target = $region21
    $region20: #{tpu_custom_call.1} parent=1 // pred_region
      _
    $region21: #{tpu_custom_call.1} parent=1 // pred_fallthru
      _
    // Predicated region
    $region22: #{tpu_custom_call.1} parent=1 // pred_check
      _
    $region23: #{tpu_custom_call.1} parent=1 // pred_check_branch
      %64 = sbr.rel (0) target = $region25
    $region24: #{tpu_custom_call.1} parent=1 // pred_region
      %65 = dma.done [#allocation3], 128
    $region25: #{tpu_custom_call.1} parent=1 // pred_fallthru
      _
    // Predicated region
    $region26: #{tpu_custom_call.1} parent=1 // pred_check
      _
    $region27: #{tpu_custom_call.1} parent=1 // pred_check_branch
      %67 = sbr.rel (0) target = $region29
    $region28: #{tpu_custom_call.1} parent=1 // pred_region
      %68 = dma.done [#allocation5], 512
    $region29: #{tpu_custom_call.1} parent=1 // pred_fallthru
      _
    // Predicated region
    $region30: #{tpu_custom_call.1} parent=1 // pred_check
      _
    $region31: #{tpu_custom_call.1} parent=1 // pred_check_branch
      %70 = sbr.rel (0) target = $region33
    $region32: #{tpu_custom_call.1} parent=1 // pred_region
      %71 = dma.done [#allocation5], 2048
    $region33: #{tpu_custom_call.1} parent=1 // pred_fallthru
      _
    // Predicated region
    $region34: #{tpu_custom_call.1} parent=1 // pred_check
      _
    $region35: #{tpu_custom_call.1} parent=1 // pred_check_branch
      %73 = sbr.rel (0) target = $region37
    $region36: #{tpu_custom_call.1} parent=1 // pred_region
      %74 = dma.done [#allocation8], 1024
    $region37: #{tpu_custom_call.1} parent=1 // pred_fallthru
      _
    %v76 = vld [vmem:[#allocation2] sm:$0xf]
    %v77 = vld [vmem:[#allocation2 + $0x4] sm:$0xf]
    %v78 = vld [vmem:[%s4] sm:$0x3]
    %v79 = vld [vmem:[%s4 + $0x2] sm:$0x1]
    %v80 = vld [vmem:[%s4 + $0x3] sm:$0x1]
    %v81 = vld [vmem:[#allocation4] sm:$0xff]
    %v82 = vld [vmem:[#allocation4 + $0x8] sm:$0xff]
    %v83 = vld [vmem:[#allocation4 + $0x10] sm:$0xff]
    %v84 = vld [vmem:[#allocation4 + $0x18] sm:$0xff]
    %v86 = vlaneseq
    %v87 = vshrl.u32 %v86, 7
    %v88 = vsub.s32 0, %v87
    %v89 = vrot.slane %v78, %v88
    %v90 = vlaneseq
    %v91 = vshrl.u32 %v90, 7
    %v92 = vsub.s32 1, %v91
    %v93 = vrot.slane %v78, %v92
    %v98 = vunpack.c.l.b16 %v76
    %v99 = vunpack.c.l.b16 %v77
    %v100 = vpack.c.b16 %v99, %v98
    %v105 = vunpack.c.l.b16 %v81
    %v106 = vunpack.c.h.b16 %v81
    %v107 = vunpack.c.l.b16 %v82
    %v108 = vunpack.c.h.b16 %v82
    %v109 = vunpack.c.l.b16 %v83
    %v110 = vunpack.c.h.b16 %v83
    %v111 = vunpack.c.l.b16 %v84
    %v112 = vunpack.c.h.b16 %v84
    %v113 = vpack.c.b16 %v107, %v105
    %v114 = vpack.c.b16 %v108, %v106
    %v115 = vpack.c.b16 %v111, %v109
    %v116 = vpack.c.b16 %v112, %v110
    %vm121 = vcmask 261120
    %v123 = vsel %vm121, %v100, 0
    %125 = vmatprep.subr.bf16.mxu0 %v114
    %126 = vmatpush1.bf16.msra.mxu0 %v113
    %127 = vmatprep.subr.bf16.mxu0 %v116
    %128 = vmatpush1.bf16.msra.mxu0 %v115
    %129 = vmatprep.subr.bf16.mxu0 0
    %130 = vmatpush1.bf16.msra.mxu0 0
    %131 = vmatprep.subr.bf16.mxu0 0
    %132 = vmatpush1.bf16.msra.mxu0 0
    %133 = vmatprep.subr.bf16.mxu0 0
    %134 = vmatpush1.bf16.msra.mxu0 0
    %135 = vmatprep.subr.bf16.mxu0 0
    %136 = vmatpush1.bf16.msra.mxu0 0
    %137 = vmatprep.subr.bf16.mxu0 0
    %138 = vmatpush1.bf16.msra.mxu0 0
    %139 = vmatprep.subr.bf16.mxu0 0
    %140 = vmatpush1.bf16.msra.mxu0 0
    %141 = vmatprep.subr.bf16.mxu0 0
    %142 = vmatpush1.bf16.msra.mxu0 0
    %143 = vmatprep.subr.bf16.mxu0 0
    %144 = vmatpush1.bf16.msra.mxu0 0
    %145 = vmatprep.subr.bf16.mxu0 0
    %146 = vmatpush1.bf16.msra.mxu0 0
    %147 = vmatprep.subr.bf16.mxu0 0
    %148 = vmatpush1.bf16.msra.mxu0 0
    %149 = vmatprep.subr.bf16.mxu0 0
    %150 = vmatpush1.bf16.msra.mxu0 0
    %151 = vmatprep.subr.bf16.mxu0 0
    %152 = vmatpush1.bf16.msra.mxu0 0
    %153 = vmatprep.subr.bf16.mxu0 0
    %154 = vmatpush1.bf16.msra.mxu0 0
    %155 = vmatprep.subr.bf16.mxu0 0
    %156 = vmatpush1.bf16.msra.mxu0 0
    %157 = vmatprep.mubr.bf16.mxu0 0
    %158 = vmatmul.mubr.bf16.gmra.mrb[0].mxu0 %v123
    %v159 = vpop.f32.mrb[0].mxu0
    %v160 = vadd.f32 %v89, %v159
    %v161 = vpop.f32.mrb[0].mxu0
    %v162 = vadd.f32 %v93, %v161
    %v163 = vpop.f32.mrb[0].mxu0
    %v164 = vadd.f32 %v89, %v163
    %v165 = vpop.f32.mrb[0].mxu0
    %v166 = vadd.f32 %v93, %v165
    %167 = vdwg.mxu0
    %v168 = vmax.f32 %v160, 0.0
    %v169 = vmax.f32 %v162, 0.0
    %v170 = vmax.f32 %v164, 0.0
    %v171 = vmax.f32 %v166, 0.0
    %v172 = vpack.c.bf16 %v170, %v168
    %v173 = vpack.c.bf16 %v171, %v169
    %v174 = vld [vmem:[#allocation6] sm:$0xf]
    %v175 = vld [vmem:[#allocation6 + $0x4] sm:$0xf]
    %v176 = vld [vmem:[#allocation6 + $0x8] sm:$0xf]
    %v177 = vld [vmem:[#allocation6 + $0xc] sm:$0xf]
    %v178 = vld [vmem:[#allocation6 + $0x10] sm:$0xf]
    %v179 = vld [vmem:[#allocation6 + $0x14] sm:$0xf]
    %v180 = vld [vmem:[#allocation6 + $0x18] sm:$0xf]
    %v181 = vld [vmem:[#allocation6 + $0x1c] sm:$0xf]
    %v182 = vld [vmem:[#allocation6 + $0x20] sm:$0xf]
    %v183 = vld [vmem:[#allocation6 + $0x24] sm:$0xf]
    %v184 = vld [vmem:[#allocation6 + $0x28] sm:$0xf]
    %v185 = vld [vmem:[#allocation6 + $0x2c] sm:$0xf]
    %v186 = vld [vmem:[#allocation6 + $0x30] sm:$0xf]
    %v187 = vld [vmem:[#allocation6 + $0x34] sm:$0xf]
    %v188 = vld [vmem:[#allocation6 + $0x38] sm:$0xf]
    %v189 = vld [vmem:[#allocation6 + $0x3c] sm:$0xf]
    %v190 = vld [vmem:[#allocation6 + $0x40] sm:$0xf]
    %v191 = vld [vmem:[#allocation6 + $0x44] sm:$0xf]
    %v192 = vld [vmem:[#allocation6 + $0x48] sm:$0xf]
    %v193 = vld [vmem:[#allocation6 + $0x4c] sm:$0xf]
    %v194 = vld [vmem:[#allocation6 + $0x50] sm:$0xf]
    %v195 = vld [vmem:[#allocation6 + $0x54] sm:$0xf]
    %v196 = vld [vmem:[#allocation6 + $0x58] sm:$0xf]
    %v197 = vld [vmem:[#allocation6 + $0x5c] sm:$0xf]
    %v198 = vld [vmem:[#allocation6 + $0x60] sm:$0xf]
    %v199 = vld [vmem:[#allocation6 + $0x64] sm:$0xf]
    %v200 = vld [vmem:[#allocation6 + $0x68] sm:$0xf]
    %v201 = vld [vmem:[#allocation6 + $0x6c] sm:$0xf]
    %v202 = vld [vmem:[#allocation6 + $0x70] sm:$0xf]
    %v203 = vld [vmem:[#allocation6 + $0x74] sm:$0xf]
    %v204 = vld [vmem:[#allocation6 + $0x78] sm:$0xf]
    %v205 = vld [vmem:[#allocation6 + $0x7c] sm:$0xf]
    %v207 = vlaneseq
    %v208 = vshrl.u32 %v207, 7
    %v209 = vsub.s32 0, %v208
    %v210 = vrot.slane %v79, %v209
    %v244 = vunpack.c.l.b16 %v174
    %v245 = vunpack.c.l.b16 %v175
    %v246 = vunpack.c.l.b16 %v176
    %v247 = vunpack.c.l.b16 %v177
    %v248 = vunpack.c.l.b16 %v178
    %v249 = vunpack.c.l.b16 %v179
    %v250 = vunpack.c.l.b16 %v180
    %v251 = vunpack.c.l.b16 %v181
    %v252 = vunpack.c.l.b16 %v182
    %v253 = vunpack.c.l.b16 %v183
    %v254 = vunpack.c.l.b16 %v184
    %v255 = vunpack.c.l.b16 %v185
    %v256 = vunpack.c.l.b16 %v186
    %v257 = vunpack.c.l.b16 %v187
    %v258 = vunpack.c.l.b16 %v188
    %v259 = vunpack.c.l.b16 %v189
    %v260 = vunpack.c.l.b16 %v190
    %v261 = vunpack.c.l.b16 %v191
    %v262 = vunpack.c.l.b16 %v192
    %v263 = vunpack.c.l.b16 %v193
    %v264 = vunpack.c.l.b16 %v194
    %v265 = vunpack.c.l.b16 %v195
    %v266 = vunpack.c.l.b16 %v196
    %v267 = vunpack.c.l.b16 %v197
    %v268 = vunpack.c.l.b16 %v198
    %v269 = vunpack.c.l.b16 %v199
    %v270 = vunpack.c.l.b16 %v200
    %v271 = vunpack.c.l.b16 %v201
    %v272 = vunpack.c.l.b16 %v202
    %v273 = vunpack.c.l.b16 %v203
    %v274 = vunpack.c.l.b16 %v204
    %v275 = vunpack.c.l.b16 %v205
    %v276 = vpack.c.b16 %v245, %v244
    %v277 = vpack.c.b16 %v247, %v246
    %v278 = vpack.c.b16 %v249, %v248
    %v279 = vpack.c.b16 %v251, %v250
    %v280 = vpack.c.b16 %v253, %v252
    %v281 = vpack.c.b16 %v255, %v254
    %v282 = vpack.c.b16 %v257, %v256
    %v283 = vpack.c.b16 %v259, %v258
    %v284 = vpack.c.b16 %v261, %v260
    %v285 = vpack.c.b16 %v263, %v262
    %v286 = vpack.c.b16 %v265, %v264
    %v287 = vpack.c.b16 %v267, %v266
    %v288 = vpack.c.b16 %v269, %v268
    %v289 = vpack.c.b16 %v271, %v270
    %v290 = vpack.c.b16 %v273, %v272
    %v291 = vpack.c.b16 %v275, %v274
    %308 = vmatprep.subr.bf16.mxu0 0
    %309 = vmatpush1.bf16.msra.mxu0 %v276
    %310 = vmatprep.subr.bf16.mxu0 0
    %311 = vmatpush1.bf16.msra.mxu0 %v277
    %312 = vmatprep.subr.bf16.mxu0 0
    %313 = vmatpush1.bf16.msra.mxu0 %v278
    %314 = vmatprep.subr.bf16.mxu0 0
    %315 = vmatpush1.bf16.msra.mxu0 %v279
    %316 = vmatprep.subr.bf16.mxu0 0
    %317 = vmatpush1.bf16.msra.mxu0 %v280
    %318 = vmatprep.subr.bf16.mxu0 0
    %319 = vmatpush1.bf16.msra.mxu0 %v281
    %320 = vmatprep.subr.bf16.mxu0 0
    %321 = vmatpush1.bf16.msra.mxu0 %v282
    %322 = vmatprep.subr.bf16.mxu0 0
    %323 = vmatpush1.bf16.msra.mxu0 %v283
    %324 = vmatprep.subr.bf16.mxu0 0
    %325 = vmatpush1.bf16.msra.mxu0 %v284
    %326 = vmatprep.subr.bf16.mxu0 0
    %327 = vmatpush1.bf16.msra.mxu0 %v285
    %328 = vmatprep.subr.bf16.mxu0 0
    %329 = vmatpush1.bf16.msra.mxu0 %v286
    %330 = vmatprep.subr.bf16.mxu0 0
    %331 = vmatpush1.bf16.msra.mxu0 %v287
    %332 = vmatprep.subr.bf16.mxu0 0
    %333 = vmatpush1.bf16.msra.mxu0 %v288
    %334 = vmatprep.subr.bf16.mxu0 0
    %335 = vmatpush1.bf16.msra.mxu0 %v289
    %336 = vmatprep.subr.bf16.mxu0 0
    %337 = vmatpush1.bf16.msra.mxu0 %v290
    %338 = vmatprep.subr.bf16.mxu0 0
    %339 = vmatpush1.bf16.msra.mxu0 %v291
    %340 = vmatprep.mubr.bf16.mxu0 %v173
    %341 = vmatmul.mubr.bf16.gmra.mrb[0].mxu0 %v172
    %v342 = vpop.f32.mrb[0].mxu0
    %v343 = vadd.f32 %v210, %v342
    %v344 = vpop.f32.mrb[0].mxu0
    %v345 = vpop.f32.mrb[0].mxu0
    %v346 = vadd.f32 %v210, %v345
    %v347 = vpop.f32.mrb[0].mxu0
    %348 = vdwg.mxu0
    %v349 = vmax.f32 %v343, 0.0
    %v350 = vmax.f32 %v346, 0.0
    %v351 = vpack.c.bf16 %v350, %v349
    %v352 = vld [vmem:[#allocation7] sm:$0xf]
    %v353 = vld [vmem:[#allocation7 + $0x4] sm:$0xf]
    %v354 = vld [vmem:[#allocation7 + $0x8] sm:$0xf]
    %v355 = vld [vmem:[#allocation7 + $0xc] sm:$0xf]
    %v356 = vld [vmem:[#allocation7 + $0x10] sm:$0xf]
    %v357 = vld [vmem:[#allocation7 + $0x14] sm:$0xf]
    %v358 = vld [vmem:[#allocation7 + $0x18] sm:$0xf]
    %v359 = vld [vmem:[#allocation7 + $0x1c] sm:$0xf]
    %v360 = vld [vmem:[#allocation7 + $0x20] sm:$0xf]
    %v361 = vld [vmem:[#allocation7 + $0x24] sm:$0xf]
    %v362 = vld [vmem:[#allocation7 + $0x28] sm:$0xf]
    %v363 = vld [vmem:[#allocation7 + $0x2c] sm:$0xf]
    %v364 = vld [vmem:[#allocation7 + $0x30] sm:$0xf]
    %v365 = vld [vmem:[#allocation7 + $0x34] sm:$0xf]
    %v366 = vld [vmem:[#allocation7 + $0x38] sm:$0xf]
    %v367 = vld [vmem:[#allocation7 + $0x3c] sm:$0xf]
    %v369 = vlaneseq
    %v370 = vshrl.u32 %v369, 7
    %v371 = vsub.s32 0, %v370
    %v372 = vrot.slane %v80, %v371
    %v390 = vunpack.c.l.b16 %v352
    %v391 = vunpack.c.l.b16 %v353
    %v392 = vunpack.c.l.b16 %v354
    %v393 = vunpack.c.l.b16 %v355
    %v394 = vunpack.c.l.b16 %v356
    %v395 = vunpack.c.l.b16 %v357
    %v396 = vunpack.c.l.b16 %v358
    %v397 = vunpack.c.l.b16 %v359
    %v398 = vunpack.c.l.b16 %v360
    %v399 = vunpack.c.l.b16 %v361
    %v400 = vunpack.c.l.b16 %v362
    %v401 = vunpack.c.l.b16 %v363
    %v402 = vunpack.c.l.b16 %v364
    %v403 = vunpack.c.l.b16 %v365
    %v404 = vunpack.c.l.b16 %v366
    %v405 = vunpack.c.l.b16 %v367
    %v406 = vpack.c.b16 %v391, %v390
    %v407 = vpack.c.b16 %v393, %v392
    %v408 = vpack.c.b16 %v395, %v394
    %v409 = vpack.c.b16 %v397, %v396
    %v410 = vpack.c.b16 %v399, %v398
    %v411 = vpack.c.b16 %v401, %v400
    %v412 = vpack.c.b16 %v403, %v402
    %v413 = vpack.c.b16 %v405, %v404
    %422 = vmatprep.subr.bf16.mxu0 0
    %423 = vmatpush1.bf16.msra.mxu0 %v406
    %424 = vmatprep.subr.bf16.mxu0 0
    %425 = vmatpush1.bf16.msra.mxu0 %v407
    %426 = vmatprep.subr.bf16.mxu0 0
    %427 = vmatpush1.bf16.msra.mxu0 %v408
    %428 = vmatprep.subr.bf16.mxu0 0
    %429 = vmatpush1.bf16.msra.mxu0 %v409
    %430 = vmatprep.subr.bf16.mxu0 0
    %431 = vmatpush1.bf16.msra.mxu0 %v410
    %432 = vmatprep.subr.bf16.mxu0 0
    %433 = vmatpush1.bf16.msra.mxu0 %v411
    %434 = vmatprep.subr.bf16.mxu0 0
    %435 = vmatpush1.bf16.msra.mxu0 %v412
    %436 = vmatprep.subr.bf16.mxu0 0
    %437 = vmatpush1.bf16.msra.mxu0 %v413
    %438 = vmatprep.subr.bf16.mxu0 0
    %439 = vmatpush1.bf16.msra.mxu0 0
    %440 = vmatprep.subr.bf16.mxu0 0
    %441 = vmatpush1.bf16.msra.mxu0 0
    %442 = vmatprep.subr.bf16.mxu0 0
    %443 = vmatpush1.bf16.msra.mxu0 0
    %444 = vmatprep.subr.bf16.mxu0 0
    %445 = vmatpush1.bf16.msra.mxu0 0
    %446 = vmatprep.subr.bf16.mxu0 0
    %447 = vmatpush1.bf16.msra.mxu0 0
    %448 = vmatprep.subr.bf16.mxu0 0
    %449 = vmatpush1.bf16.msra.mxu0 0
    %450 = vmatprep.subr.bf16.mxu0 0
    %451 = vmatpush1.bf16.msra.mxu0 0
    %452 = vmatprep.subr.bf16.mxu0 0
    %453 = vmatpush1.bf16.msra.mxu0 0
    %454 = vmatprep.mubr.bf16.mxu0 0
    %455 = vmatmul.mubr.bf16.gmra.mrb[0].mxu0 %v351
    %v456 = vpop.f32.mrb[0].mxu0
    %v457 = vadd.f32 %v372, %v456
    %v458 = vpop.f32.mrb[0].mxu0
    %v459 = vpop.f32.mrb[0].mxu0
    %v460 = vadd.f32 %v372, %v459
    %v461 = vpop.f32.mrb[0].mxu0
    %462 = vdwg.mxu0
    %vm463 = vcmask 31744
    %464 = vst.msk [vmem:[%s5] sm:$0xff] %vm463, %v457
    %465 = vst.msk [vmem:[%s5 + $0x8] sm:$0xff] %vm463, %v460
    // Predicated region
    $region38: #{tpu_custom_call.1} parent=1 // pred_check
      _
    $region39: #{tpu_custom_call.1} parent=1 // pred_check_branch
      %467 = sbr.rel (0) target = $region41
    $region40: #{tpu_custom_call.1} parent=1 // pred_region
      _
    $region41: #{tpu_custom_call.1} parent=1 // pred_fallthru
      _
    // Predicated region
    $region42: #{tpu_custom_call.1} parent=1 // pred_check
      _
    $region43: #{tpu_custom_call.1} parent=1 // pred_check_branch
      %469 = sbr.rel (0) target = $region45
    $region44: #{tpu_custom_call.1} parent=1 // pred_region
      _
    $region45: #{tpu_custom_call.1} parent=1 // pred_fallthru
      _
    %470 = vsyncpa [#allocation3], 1
    %471 = vsyncpa [#allocation5], 1
    %472 = vsyncpa [#allocation8], 1

</llo_original>
